<compile_context>
chip_gen: v7x
topology: tpu7x:2x2x1
jax: 0.10.0
libtpu: 0.0.40
codegen_flags: <defaults>
</compile_context>

<pallas_src>
import jax
import jax.numpy as jnp
from jax.experimental import pallas as pl
from jax.experimental.pallas import tpu as pltpu


def _round_up(x, m):
    return (x + m - 1) // m * m


def _cdiv(a, b):
    return -(-a // b)


def _choose_tile_n(n, tile_n):
    """Clamp tile_n to a 256 multiple, shrink for small N, and prefer an even
    tile count so dimension_semantics=('parallel',) splits evenly across the
    two TensorCores of a v7x chip (harmless on single-TC v5e/v6e)."""
    tile_n = max(256, min(_round_up(tile_n, 256), _round_up(n, 256)))
    n_tiles = _cdiv(n, tile_n)
    if n_tiles > 1 and n_tiles % 2 == 1:
        tile_n = max(256, _round_up(_cdiv(n, n_tiles + 1), 256))
        n_tiles = _cdiv(n, tile_n)
    return tile_n, n_tiles


def bfm_kernel(q_ref, rotf_ref, trans_ref, mu_ref, wb_ref, out_ref):
    # q_ref    : (B*3, 3K)      bf16  rotation(*1000) + signs + /1000 fused into params
    # rotf_ref : (B*3, 3)       f32   sign * rotate * 1000 (for the f32 mean-face term)
    # trans_ref: (B*3, 1)       f32   sign * translate + [0, 112, 0]
    # mu_ref   : (3, tile_n)    f32   coordinate-major mean face
    # wb_ref   : (3K, tile_n)   bf16  merged shape+expression basis, flattened (c*K + k)
    # out_ref  : (B*3, tile_n)  f32
    #
    # One MXU matmul for the deviation term (f32 accumulation) ...
    acc = jnp.dot(q_ref[...], wb_ref[...], preferred_element_type=jnp.float32)

    # ... plus the rotated mean face, kept fully in f32 on the VPU (3 broadcast
    # FMAs per row — hidden under the basis DMA), plus translate/offset.
    mu = mu_ref[...]
    rf = rotf_ref[...]
    mu_term = (rf[:, 0:1] * mu[0:1, :]
               + rf[:, 1:2] * mu[1:2, :]
               + rf[:, 2:3] * mu[2:3, :])

    out_ref[...] = acc + mu_term + trans_ref[...]   # single dense full-block store


def prepare_model(mu, w_shape, w_exp, *, tile_n=4096, basis_dtype=jnp.bfloat16):
    """One-time re-layout of the model buffers (do this once, not per call).

    mu: (3N,) [x0,y0,z0,...], w_shape: (99, 3N), w_exp: (29, 3N).
    Returns a dict with:
      mu_xyz  : (3, n_pad)        f32   coordinate-major mean face (zero-padded)
      wb_flat : (3K, n_pad)       bf16  merged basis, row index = c*K + k
      n_vertices, n_shape, n_exp, tile_n
    """
    S, three_n = w_shape.shape
    E = w_exp.shape[0]
    N = three_n // 3
    K = S + E

    tile_n, n_tiles = _choose_tile_n(N, tile_n)
    n_pad = tile_n * n_tiles

    mu_xyz = jnp.asarray(mu, jnp.float32).reshape(N, 3).T                 # (3, N)
    ws_xyz = jnp.asarray(w_shape, jnp.float32).reshape(S, N, 3).transpose(2, 0, 1)
    we_xyz = jnp.asarray(w_exp, jnp.float32).reshape(E, N, 3).transpose(2, 0, 1)
    wb = jnp.concatenate([ws_xyz, we_xyz], axis=1)                        # (3, K, N)
    wb_flat = wb.reshape(3 * K, N).astype(basis_dtype)                    # (3K, N)

    if n_pad != N:
        mu_xyz = jnp.pad(mu_xyz, ((0, 0), (0, n_pad - N)))
        wb_flat = jnp.pad(wb_flat, ((0, 0), (0, n_pad - N)))

    return dict(mu_xyz=mu_xyz, wb_flat=wb_flat,
                n_vertices=N, n_shape=S, n_exp=E, tile_n=tile_n)


def bfm_forward(shape_para, exp_para, rotate, translate, model):
    """Fused BFM forward.  All tiny per-batch folds (rotate*1000, shape/1000,
    y/z sign flips, +112 y-offset) are applied to (B*3, .) operands here; the
    kernel then does exactly one matmul + two VPU adds per vertex tile."""
    mu_xyz = model["mu_xyz"]
    wb_flat = model["wb_flat"]
    N = model["n_vertices"]
    S = model["n_shape"]
    E = model["n_exp"]
    tile_n = model["tile_n"]
    K = S + E
    n_pad = mu_xyz.shape[1]
    assert wb_flat.shape == (3 * K, n_pad)
    assert n_pad % tile_n == 0

    B = shape_para.shape[0]
    assert shape_para.shape == (B, S) and exp_para.shape == (B, E)

    # params: /1000 folded into the shape part.
    params = jnp.concatenate([shape_para.astype(jnp.float32) * 1e-3,
                              exp_para.astype(jnp.float32)], axis=1)      # (B, K)

    # Sign / offset fixups: row0 = +res, row1 = 112 - res, row2 = -res.
    sign = jnp.array([1.0, -1.0, -1.0], jnp.float32)
    off = jnp.array([0.0, 112.0, 0.0], jnp.float32)

    rot1000 = rotate.astype(jnp.float32) * 1000.0                         # (B, 3, 3)
    rotf = (sign[None, :, None] * rot1000).reshape(B * 3, 3)              # (B*3, 3) f32

    # q[b*3+r, c*K+k] = sign[r] * rot1000[b,r,c] * params[b,k]   (tiny outer product)
    q = (rotf[:, :, None] * jnp.repeat(params, 3, axis=0)[:, None, :])    # (B*3, 3, K)
    q = q.reshape(B * 3, 3 * K).astype(wb_flat.dtype)                     # bf16 MXU LHS

    trans = (sign[None, :] * translate[:, :, 0].astype(jnp.float32)
             + off[None, :]).reshape(B * 3, 1)                            # (B*3, 1)

    grid = n_pad // tile_n
    out = pl.pallas_call(
        bfm_kernel,
        out_shape=jax.ShapeDtypeStruct((B * 3, n_pad), jnp.float32),
        grid_spec=pltpu.PrefetchScalarGridSpec(
            num_scalar_prefetch=0,
            grid=(grid,),
            in_specs=[
                pl.BlockSpec((B * 3, 3 * K), lambda j: (0, 0)),   # q (grid-invariant)
                pl.BlockSpec((B * 3, 3), lambda j: (0, 0)),       # rotf
                pl.BlockSpec((B * 3, 1), lambda j: (0, 0)),       # trans
                pl.BlockSpec((3, tile_n), lambda j: (0, j)),      # mu tile
                pl.BlockSpec((3 * K, tile_n), lambda j: (0, j)),  # basis tile (dominant DMA)
            ],
            out_specs=pl.BlockSpec((B * 3, tile_n), lambda j: (0, j)),
        ),
        compiler_params=pltpu.CompilerParams(
            # N-tiles are fully independent -> shard across both TCs on v7x;
            # harmless no-op on single-TC v5e/v6e.
            dimension_semantics=("parallel",)),
    )(q, rotf, trans, mu_xyz, wb_flat)

    out = out.reshape(B, 3, n_pad)                                        # free split
    return out[:, :, :N] if n_pad != N else out


if __name__ == "__main__":
    key = jax.random.PRNGKey(0)
    B, S, E, N = 2, 99, 29, 512        # small synthetic face model: N vertices
    ks = jax.random.split(key, 7)

    # forward() inputs
    shape_para = jax.random.normal(ks[0], (B, S), jnp.float32)
    exp_para = jax.random.normal(ks[1], (B, E), jnp.float32)
    rotate = jax.random.normal(ks[2], (B, 3, 3), jnp.float32) * 0.01
    translate = jax.random.normal(ks[3], (B, 3, 1), jnp.float32)

    # deterministic synthetic model buffers (shapes per __init__:
    # mu (3N,), w_shape (99, 3N), w_exp (29, 3N))
    mu = jax.random.normal(ks[4], (3 * N,), jnp.float32)
    mu = mu.at[0::3].add(-0.231)       # x-coordinate offset applied in __init__
    w_shape = jax.random.normal(ks[5], (S, 3 * N), jnp.float32)
    w_exp = jax.random.normal(ks[6], (E, 3 * N), jnp.float32) * 0.01

    # one-time coordinate-major re-layout, merged + flattened bf16 basis
    model = prepare_model(mu, w_shape, w_exp, tile_n=4096)

    out = bfm_forward(shape_para, exp_para, rotate, translate, model)
    out = jax.block_until_ready(out)

    # pure-JAX reference (exact PyTorch semantics, f32)
    hp = jax.lax.Precision.HIGHEST
    face = (mu[None, :]
            + jnp.matmul(shape_para, w_shape, precision=hp) / 1000.0
            + jnp.matmul(exp_para, w_exp, precision=hp))
    face3 = jnp.transpose(face.reshape(B, N, 3), (0, 2, 1))               # (B, 3, N)
    rotated = jnp.einsum('brc,bcn->brn', rotate * 1000.0, face3, precision=hp)
    res = rotated + translate
    res = res.at[:, 1, :].multiply(-1.0)
    res = res.at[:, 2, :].multiply(-1.0)
    res = res.at[:, 1, :].add(112.0)

    assert out.shape == (B, 3, N)
    # Tolerance covers bf16 storage of the deviation basis/params (the mean-face
    # term and all accumulation stay f32).
    assert jnp.allclose(out, res, rtol=2e-3, atol=2e-2), (
        float(jnp.max(jnp.abs(out - res))))
    print("KERNEL_OK")
</pallas_src>

<mosaic_0001>
module attributes {stable_mosaic.version = 11 : i64} {
  func.func @bfm_kernel(%arg0: i32, %arg1: memref<6x384xbf16, #tpu.memory_space<vmem>>, %arg2: memref<6x3xf32, #tpu.memory_space<vmem>>, %arg3: memref<6x1xf32, #tpu.memory_space<vmem>>, %arg4: memref<3x512xf32, #tpu.memory_space<vmem>>, %arg5: memref<384x512xbf16, #tpu.memory_space<vmem>>, %arg6: memref<6x512xf32, #tpu.memory_space<vmem>>) attributes {dimension_semantics = [#tpu.dimension_semantics<parallel>], iteration_bounds = array<i64: 1>, scalar_prefetch = 0 : i64, scratch_operands = 0 : i64, tpu.core_type = #tpu.core_type<tc>, window_params = [{pipeline_mode = #tpu.pipeline_mode<synchronous>, transform_indices = @transform_0, window_bounds = array<i64: 6, 384>}, {pipeline_mode = #tpu.pipeline_mode<synchronous>, transform_indices = @transform_1, window_bounds = array<i64: 6, 3>}, {pipeline_mode = #tpu.pipeline_mode<synchronous>, transform_indices = @transform_2, window_bounds = array<i64: 6, 1>}, {transform_indices = @transform_3, window_bounds = array<i64: 3, 512>}, {transform_indices = @transform_4, window_bounds = array<i64: 384, 512>}, {transform_indices = @transform_5, window_bounds = array<i64: 6, 512>}]} {
    %c0 = arith.constant 0 : index
    %c0_0 = arith.constant 0 : index
    %0 = vector.load %arg1[%c0, %c0_0] : memref<6x384xbf16, #tpu.memory_space<vmem>>, vector<6x384xbf16>
    %c0_1 = arith.constant 0 : index
    %c0_2 = arith.constant 0 : index
    %1 = vector.load %arg5[%c0_1, %c0_2] : memref<384x512xbf16, #tpu.memory_space<vmem>>, vector<384x512xbf16>
    %cst = arith.constant dense<0.000000e+00> : vector<6x512xf32>
    %2 = tpu.matmul %0, %1, %cst {dimension_numbers = #tpu.dot_dimension_numbers<[1], [0], [0], [1], [0, 0, 1, 1], [], []>} : vector<6x384xbf16>, vector<384x512xbf16>, vector<6x512xf32> -> vector<6x512xf32>
    %c0_3 = arith.constant 0 : index
    %c0_4 = arith.constant 0 : index
    %3 = vector.load %arg4[%c0_3, %c0_4] : memref<3x512xf32, #tpu.memory_space<vmem>>, vector<3x512xf32>
    %c0_5 = arith.constant 0 : index
    %c0_6 = arith.constant 0 : index
    %4 = vector.load %arg2[%c0_5, %c0_6] : memref<6x3xf32, #tpu.memory_space<vmem>>, vector<6x3xf32>
    %5 = vector.extract_strided_slice %4 {offsets = [0, 0], sizes = [6, 1], strides = [1, 1]} : vector<6x3xf32> to vector<6x1xf32>
    %6 = vector.extract_strided_slice %3 {offsets = [0, 0], sizes = [1, 512], strides = [1, 1]} : vector<3x512xf32> to vector<1x512xf32>
    %7 = vector.broadcast %5 : vector<6x1xf32> to vector<6x512xf32>
    %8 = vector.broadcast %6 : vector<1x512xf32> to vector<6x512xf32>
    %9 = arith.mulf %7, %8 : vector<6x512xf32>
    %10 = vector.extract_strided_slice %4 {offsets = [0, 1], sizes = [6, 1], strides = [1, 1]} : vector<6x3xf32> to vector<6x1xf32>
    %11 = vector.extract_strided_slice %3 {offsets = [1, 0], sizes = [1, 512], strides = [1, 1]} : vector<3x512xf32> to vector<1x512xf32>
    %12 = vector.broadcast %10 : vector<6x1xf32> to vector<6x512xf32>
    %13 = vector.broadcast %11 : vector<1x512xf32> to vector<6x512xf32>
    %14 = arith.mulf %12, %13 : vector<6x512xf32>
    %15 = arith.addf %9, %14 : vector<6x512xf32>
    %16 = vector.extract_strided_slice %4 {offsets = [0, 2], sizes = [6, 1], strides = [1, 1]} : vector<6x3xf32> to vector<6x1xf32>
    %17 = vector.extract_strided_slice %3 {offsets = [2, 0], sizes = [1, 512], strides = [1, 1]} : vector<3x512xf32> to vector<1x512xf32>
    %18 = vector.broadcast %16 : vector<6x1xf32> to vector<6x512xf32>
    %19 = vector.broadcast %17 : vector<1x512xf32> to vector<6x512xf32>
    %20 = arith.mulf %18, %19 : vector<6x512xf32>
    %21 = arith.addf %15, %20 : vector<6x512xf32>
    %22 = arith.addf %2, %21 : vector<6x512xf32>
    %c0_7 = arith.constant 0 : index
    %c0_8 = arith.constant 0 : index
    %23 = vector.load %arg3[%c0_7, %c0_8] : memref<6x1xf32, #tpu.memory_space<vmem>>, vector<6x1xf32>
    %24 = vector.broadcast %23 : vector<6x1xf32> to vector<6x512xf32>
    %25 = arith.addf %22, %24 : vector<6x512xf32>
    %c0_9 = arith.constant 0 : index
    %c0_10 = arith.constant 0 : index
    %26 = vector.load %arg6[%c0_9, %c0_10] : memref<6x512xf32, #tpu.memory_space<vmem>>, vector<6x512xf32>
    tpu.vector_store %arg6[%c0_9, %c0_10], %25 {strides = array<i32>} : memref<6x512xf32, #tpu.memory_space<vmem>>, vector<6x512xf32>,
    return
  }
  func.func @transform_0(%arg0: i32) -> (i32, i32) {
    %c0_i32 = arith.constant 0 : i32
    %c0_i32_0 = arith.constant 0 : i32
    %c0_i32_1 = arith.constant 0 : i32
    return %c0_i32, %c0_i32_0 : i32, i32
  }
  func.func @transform_1(%arg0: i32) -> (i32, i32) {
    %c0_i32 = arith.constant 0 : i32
    %c0_i32_0 = arith.constant 0 : i32
    %c0_i32_1 = arith.constant 0 : i32
    return %c0_i32, %c0_i32_0 : i32, i32
  }
  func.func @transform_2(%arg0: i32) -> (i32, i32) {
    %c0_i32 = arith.constant 0 : i32
    %c0_i32_0 = arith.constant 0 : i32
    %c0_i32_1 = arith.constant 0 : i32
    return %c0_i32, %c0_i32_0 : i32, i32
  }
  func.func @transform_3(%arg0: i32) -> (i32, i32) {
    %c0_i32 = arith.constant 0 : i32
    %c0_i32_0 = arith.constant 0 : i32
    return %c0_i32, %arg0 : i32, i32
  }
  func.func @transform_4(%arg0: i32) -> (i32, i32) {
    %c0_i32 = arith.constant 0 : i32
    %c0_i32_0 = arith.constant 0 : i32
    return %c0_i32, %arg0 : i32, i32
  }
  func.func @transform_5(%arg0: i32) -> (i32, i32) {
    %c0_i32 = arith.constant 0 : i32
    %c0_i32_0 = arith.constant 0 : i32
    return %c0_i32, %arg0 : i32, i32
  }
}

</mosaic_0001>

<llo_original>
// kernel: tpu_custom_call.1
$region0: #{tpu_custom_call.1}
  #allocation0 [shape = 'u32[]', space=smem, size = 0x4, offset = 0x4, fixed_abs, tag = 'smem constant byte address 0x4 - core index']
  #allocation1 [shape = 'u32[144,128]{1,0:T(1,128)}', space=vmem, size = 0x12000, scoped, tag = 'internal scratch']
  %s0 = inlined_call_operand.vmem [shape: bf16[6,384], index: 0, kind: input, shape index: {}]
  %s1 = inlined_call_operand.vmem [shape: f32[6,3], index: 1, kind: input, shape index: {}]
  %s2 = inlined_call_operand.vmem [shape: f32[6,1], index: 2, kind: input, shape index: {}]
  %s3 = inlined_call_operand.vmem [shape: f32[3,512], index: 3, kind: input, shape index: {}]
  %s4 = inlined_call_operand.hbm [shape: bf16[384,512], index: 4, kind: input, shape index: {}]
  %s5 = inlined_call_operand.hbm [shape: f32[6,512], index: 5, kind: output, shape index: {}]
  %s6 = sld [smem:[#allocation0]]
  $region34: #{tpu_custom_call.1} parent=0
    _
  %s8 = ssub.s32 1, %s6
  %s9 = scalar_select 0, %s8, %s6
  $region1: #{tpu_custom_call.1} parent=0
    #allocation2 [shape = 'u8[393216]{0}', space=vmem, size = 0x60000, scoped, tag = 'input window, operand 4, single buffered']
    #allocation3 [shape = 's32[1]{0}', space=sflag, size = 0x4, scoped, tag = 'scoped memory for tpu_custom_call.1']
    #allocation4 [shape = 's32[1]{0}', space=sflag, size = 0x4, scoped, tag = 'scoped memory for tpu_custom_call.1']
    #allocation5 [shape = 'u8[16384]{0}', space=vmem, size = 0x4000, scoped, tag = 'output window, operand 0, single buffered']
    %10 = vsyncpa [#allocation3], 0
    %11 = vsyncpa [#allocation4], 0
    // Predicated region
    $region2: #{tpu_custom_call.1} parent=1 // pred_check
      _
    $region3: #{tpu_custom_call.1} parent=1 // pred_check_branch
      %13 = sbr.rel (0) target = $region5
    $region4: #{tpu_custom_call.1} parent=1 // pred_region
      _
    $region5: #{tpu_custom_call.1} parent=1 // pred_fallthru
      _
    // Predicated region
    $region6: #{tpu_custom_call.1} parent=1 // pred_check
      _
    $region7: #{tpu_custom_call.1} parent=1 // pred_check_branch
      %15 = sbr.rel (0) target = $region9
    $region8: #{tpu_custom_call.1} parent=1 // pred_region
      _
    $region9: #{tpu_custom_call.1} parent=1 // pred_fallthru
      _
    // Predicated region
    $region10: #{tpu_custom_call.1} parent=1 // pred_check
      _
    $region11: #{tpu_custom_call.1} parent=1 // pred_check_branch
      %17 = sbr.rel (0) target = $region13
    $region12: #{tpu_custom_call.1} parent=1 // pred_region
      _
    $region13: #{tpu_custom_call.1} parent=1 // pred_fallthru
      _
    // Predicated region
    $region14: #{tpu_custom_call.1} parent=1 // pred_check
      _
    $region15: #{tpu_custom_call.1} parent=1 // pred_check_branch
      %19 = sbr.rel (0) target = $region17
    $region16: #{tpu_custom_call.1} parent=1 // pred_region
      _
    $region17: #{tpu_custom_call.1} parent=1 // pred_fallthru
      _
    // Predicated region
    $region18: #{tpu_custom_call.1} parent=1 // pred_check
      _
    $region19: #{tpu_custom_call.1} parent=1 // pred_check_branch
      %21 = sbr.rel (0) target = $region21
    $region20: #{tpu_custom_call.1} parent=1 // pred_region
      %s23 = ssub.s32 12288, 12288
      %24 = vsyncadd [#allocation3], %s23
      %s25 = sshll.u32 [#allocation2], 4
      %s26 = int_to_ptr.vmem [resolvable:$true] %s25
      %31 = dma.hbm_to_vmem [thread:$0]  %s4, 12288, %s26, [#allocation3], 256, 256, 16
    $region21: #{tpu_custom_call.1} parent=1 // pred_fallthru
      _
    // Predicated region
    $region22: #{tpu_custom_call.1} parent=1 // pred_check
      _
    $region23: #{tpu_custom_call.1} parent=1 // pred_check_branch
      %33 = sbr.rel (0) target = $region25
    $region24: #{tpu_custom_call.1} parent=1 // pred_region
      %34 = dma.done [#allocation3], 12288
    $region25: #{tpu_custom_call.1} parent=1 // pred_fallthru
      _
    %v36 = vld [vmem:[%s0] sm:$0x77]
    %v37 = vld [vmem:[%s0 + $0x8] sm:$0x7]
    %v38 = vld [vmem:[#allocation2] sm:$0xff]
    %v39 = vld [vmem:[#allocation2 + $0x8] sm:$0xff]
    %v40 = vld [vmem:[#allocation2 + $0x10] sm:$0xff]
    %v41 = vld [vmem:[#allocation2 + $0x18] sm:$0xff]
    %v42 = vld [vmem:[#allocation2 + $0x20] sm:$0xff]
    %v43 = vld [vmem:[#allocation2 + $0x28] sm:$0xff]
    %v44 = vld [vmem:[#allocation2 + $0x30] sm:$0xff]
    %v45 = vld [vmem:[#allocation2 + $0x38] sm:$0xff]
    %v46 = vld [vmem:[#allocation2 + $0x40] sm:$0xff]
    %v47 = vld [vmem:[#allocation2 + $0x48] sm:$0xff]
    %v48 = vld [vmem:[#allocation2 + $0x50] sm:$0xff]
    %v49 = vld [vmem:[#allocation2 + $0x58] sm:$0xff]
    %v50 = vld [vmem:[#allocation2 + $0x60] sm:$0xff]
    %v51 = vld [vmem:[#allocation2 + $0x68] sm:$0xff]
    %v52 = vld [vmem:[#allocation2 + $0x70] sm:$0xff]
    %v53 = vld [vmem:[#allocation2 + $0x78] sm:$0xff]
    %v54 = vld [vmem:[#allocation2 + $0x80] sm:$0xff]
    %v55 = vld [vmem:[#allocation2 + $0x88] sm:$0xff]
    %v56 = vld [vmem:[#allocation2 + $0x90] sm:$0xff]
    %v57 = vld [vmem:[#allocation2 + $0x98] sm:$0xff]
    %v58 = vld [vmem:[#allocation2 + $0xa0] sm:$0xff]
    %v59 = vld [vmem:[#allocation2 + $0xa8] sm:$0xff]
    %v60 = vld [vmem:[#allocation2 + $0xb0] sm:$0xff]
    %v61 = vld [vmem:[#allocation2 + $0xb8] sm:$0xff]
    %v62 = vld [vmem:[#allocation2 + $0xc0] sm:$0xff]
    %v63 = vld [vmem:[#allocation2 + $0xc8] sm:$0xff]
    %v64 = vld [vmem:[#allocation2 + $0xd0] sm:$0xff]
    %v65 = vld [vmem:[#allocation2 + $0xd8] sm:$0xff]
    %v66 = vld [vmem:[#allocation2 + $0xe0] sm:$0xff]
    %v67 = vld [vmem:[#allocation2 + $0xe8] sm:$0xff]
    %v68 = vld [vmem:[#allocation2 + $0xf0] sm:$0xff]
    %v69 = vld [vmem:[#allocation2 + $0xf8] sm:$0xff]
    %v70 = vld [vmem:[#allocation2 + $0x100] sm:$0xff]
    %v71 = vld [vmem:[#allocation2 + $0x108] sm:$0xff]
    %v72 = vld [vmem:[#allocation2 + $0x110] sm:$0xff]
    %v73 = vld [vmem:[#allocation2 + $0x118] sm:$0xff]
    %v74 = vld [vmem:[#allocation2 + $0x120] sm:$0xff]
    %v75 = vld [vmem:[#allocation2 + $0x128] sm:$0xff]
    %v76 = vld [vmem:[#allocation2 + $0x130] sm:$0xff]
    %v77 = vld [vmem:[#allocation2 + $0x138] sm:$0xff]
    %v78 = vld [vmem:[#allocation2 + $0x140] sm:$0xff]
    %v79 = vld [vmem:[#allocation2 + $0x148] sm:$0xff]
    %v80 = vld [vmem:[#allocation2 + $0x150] sm:$0xff]
    %v81 = vld [vmem:[#allocation2 + $0x158] sm:$0xff]
    %v82 = vld [vmem:[#allocation2 + $0x160] sm:$0xff]
    %v83 = vld [vmem:[#allocation2 + $0x168] sm:$0xff]
    %v84 = vld [vmem:[#allocation2 + $0x170] sm:$0xff]
    %v85 = vld [vmem:[#allocation2 + $0x178] sm:$0xff]
    %v86 = vld [vmem:[#allocation2 + $0x180] sm:$0xff]
    %v87 = vld [vmem:[#allocation2 + $0x188] sm:$0xff]
    %v88 = vld [vmem:[#allocation2 + $0x190] sm:$0xff]
    %v89 = vld [vmem:[#allocation2 + $0x198] sm:$0xff]
    %v90 = vld [vmem:[#allocation2 + $0x1a0] sm:$0xff]
    %v91 = vld [vmem:[#allocation2 + $0x1a8] sm:$0xff]
    %v92 = vld [vmem:[#allocation2 + $0x1b0] sm:$0xff]
    %v93 = vld [vmem:[#allocation2 + $0x1b8] sm:$0xff]
    %v94 = vld [vmem:[#allocation2 + $0x1c0] sm:$0xff]
    %v95 = vld [vmem:[#allocation2 + $0x1c8] sm:$0xff]
    %v96 = vld [vmem:[#allocation2 + $0x1d0] sm:$0xff]
    %v97 = vld [vmem:[#allocation2 + $0x1d8] sm:$0xff]
    %v98 = vld [vmem:[#allocation2 + $0x1e0] sm:$0xff]
    %v99 = vld [vmem:[#allocation2 + $0x1e8] sm:$0xff]
    %v100 = vld [vmem:[#allocation2 + $0x1f0] sm:$0xff]
    %v101 = vld [vmem:[#allocation2 + $0x1f8] sm:$0xff]
    %v102 = vld [vmem:[#allocation2 + $0x200] sm:$0xff]
    %v103 = vld [vmem:[#allocation2 + $0x208] sm:$0xff]
    %v104 = vld [vmem:[#allocation2 + $0x210] sm:$0xff]
    %v105 = vld [vmem:[#allocation2 + $0x218] sm:$0xff]
    %v106 = vld [vmem:[#allocation2 + $0x220] sm:$0xff]
    %v107 = vld [vmem:[#allocation2 + $0x228] sm:$0xff]
    %v108 = vld [vmem:[#allocation2 + $0x230] sm:$0xff]
    %v109 = vld [vmem:[#allocation2 + $0x238] sm:$0xff]
    %v110 = vld [vmem:[#allocation2 + $0x240] sm:$0xff]
    %v111 = vld [vmem:[#allocation2 + $0x248] sm:$0xff]
    %v112 = vld [vmem:[#allocation2 + $0x250] sm:$0xff]
    %v113 = vld [vmem:[#allocation2 + $0x258] sm:$0xff]
    %v114 = vld [vmem:[#allocation2 + $0x260] sm:$0xff]
    %v115 = vld [vmem:[#allocation2 + $0x268] sm:$0xff]
    %v116 = vld [vmem:[#allocation2 + $0x270] sm:$0xff]
    %v117 = vld [vmem:[#allocation2 + $0x278] sm:$0xff]
    %v118 = vld [vmem:[#allocation2 + $0x280] sm:$0xff]
    %v119 = vld [vmem:[#allocation2 + $0x288] sm:$0xff]
    %v120 = vld [vmem:[#allocation2 + $0x290] sm:$0xff]
    %v121 = vld [vmem:[#allocation2 + $0x298] sm:$0xff]
    %v122 = vld [vmem:[#allocation2 + $0x2a0] sm:$0xff]
    %v123 = vld [vmem:[#allocation2 + $0x2a8] sm:$0xff]
    %v124 = vld [vmem:[#allocation2 + $0x2b0] sm:$0xff]
    %v125 = vld [vmem:[#allocation2 + $0x2b8] sm:$0xff]
    %v126 = vld [vmem:[#allocation2 + $0x2c0] sm:$0xff]
    %v127 = vld [vmem:[#allocation2 + $0x2c8] sm:$0xff]
    %v128 = vld [vmem:[#allocation2 + $0x2d0] sm:$0xff]
    %v129 = vld [vmem:[#allocation2 + $0x2d8] sm:$0xff]
    %v130 = vld [vmem:[#allocation2 + $0x2e0] sm:$0xff]
    %v131 = vld [vmem:[#allocation2 + $0x2e8] sm:$0xff]
    %v132 = vld [vmem:[#allocation2 + $0x2f0] sm:$0xff]
    %v133 = vld [vmem:[#allocation2 + $0x2f8] sm:$0xff]
    %v134 = vld [vmem:[%s3] sm:$0x77]
    %v135 = vld [vmem:[%s3 + $0x8] sm:$0x77]
    %v136 = vld [vmem:[%s1] sm:$0x3f]
    %138 = vset.pattern.permute.xlu0 0
    %139 = vperm.xlu0 %138, %v136
    %v140 = vpop.permute.xlu0 %139
    %v144 = vlaneseq
    %v145 = vshrl.u32 %v144, 7
    %v146 = vsub.s32 0, %v145
    %v147 = vrot.slane %v134, %v146
    %v148 = vlaneseq
    %v149 = vshrl.u32 %v148, 7
    %v150 = vsub.s32 4, %v149
    %v151 = vrot.slane %v134, %v150
    %v152 = vlaneseq
    %v153 = vshrl.u32 %v152, 7
    %v154 = vsub.s32 0, %v153
    %v155 = vrot.slane %v135, %v154
    %v156 = vlaneseq
    %v157 = vshrl.u32 %v156, 7
    %v158 = vsub.s32 4, %v157
    %v159 = vrot.slane %v135, %v158
    %v164 = vlaneseq
    %v165 = vshrl.u32 %v164, 7
    %v166 = vsub.s32 0, %v165
    %v167 = vrot.slane %v147, %v166
    %v168 = vlaneseq
    %v169 = vshrl.u32 %v168, 7
    %v170 = vsub.s32 0, %v169
    %v171 = vrot.slane %v151, %v170
    %v172 = vlaneseq
    %v173 = vshrl.u32 %v172, 7
    %v174 = vsub.s32 0, %v173
    %v175 = vrot.slane %v155, %v174
    %v176 = vlaneseq
    %v177 = vshrl.u32 %v176, 7
    %v178 = vsub.s32 0, %v177
    %v179 = vrot.slane %v159, %v178
    %v180 = vmul.f32 %v140, %v167
    %v181 = vmul.f32 %v140, %v171
    %v182 = vmul.f32 %v140, %v175
    %v183 = vmul.f32 %v140, %v179
    %184 = vset.pattern.permute.xlu0 1
    %185 = vperm.xlu0 %184, %v136
    %v186 = vpop.permute.xlu0 %185
    %v188 = vlaneseq
    %v189 = vshrl.u32 %v188, 7
    %v190 = vsub.s32 1, %v189
    %v191 = vrot.slane %v134, %v190
    %v192 = vlaneseq
    %v193 = vshrl.u32 %v192, 7
    %v194 = vsub.s32 5, %v193
    %v195 = vrot.slane %v134, %v194
    %v196 = vlaneseq
    %v197 = vshrl.u32 %v196, 7
    %v198 = vsub.s32 1, %v197
    %v199 = vrot.slane %v135, %v198
    %v200 = vlaneseq
    %v201 = vshrl.u32 %v200, 7
    %v202 = vsub.s32 5, %v201
    %v203 = vrot.slane %v135, %v202
    %v208 = vlaneseq
    %v209 = vshrl.u32 %v208, 7
    %v210 = vsub.s32 1, %v209
    %v211 = vrot.slane %v191, %v210
    %v212 = vlaneseq
    %v213 = vshrl.u32 %v212, 7
    %v214 = vsub.s32 1, %v213
    %v215 = vrot.slane %v195, %v214
    %v216 = vlaneseq
    %v217 = vshrl.u32 %v216, 7
    %v218 = vsub.s32 1, %v217
    %v219 = vrot.slane %v199, %v218
    %v220 = vlaneseq
    %v221 = vshrl.u32 %v220, 7
    %v222 = vsub.s32 1, %v221
    %v223 = vrot.slane %v203, %v222
    %v224 = vmul.f32 %v186, %v211
    %v225 = vmul.f32 %v186, %v215
    %v226 = vmul.f32 %v186, %v219
    %v227 = vmul.f32 %v186, %v223
    %v228 = vadd.f32 %v180, %v224
    %v229 = vadd.f32 %v181, %v225
    %v230 = vadd.f32 %v182, %v226
    %v231 = vadd.f32 %v183, %v227
    %232 = vset.pattern.permute.xlu0 2
    %233 = vperm.xlu0 %232, %v136
    %v234 = vpop.permute.xlu0 %233
    %v236 = vlaneseq
    %v237 = vshrl.u32 %v236, 7
    %v238 = vsub.s32 2, %v237
    %v239 = vrot.slane %v134, %v238
    %v240 = vlaneseq
    %v241 = vshrl.u32 %v240, 7
    %v242 = vsub.s32 6, %v241
    %v243 = vrot.slane %v134, %v242
    %v244 = vlaneseq
    %v245 = vshrl.u32 %v244, 7
    %v246 = vsub.s32 2, %v245
    %v247 = vrot.slane %v135, %v246
    %v248 = vlaneseq
    %v249 = vshrl.u32 %v248, 7
    %v250 = vsub.s32 6, %v249
    %v251 = vrot.slane %v135, %v250
    %v256 = vlaneseq
    %v257 = vshrl.u32 %v256, 7
    %v258 = vsub.s32 2, %v257
    %v259 = vrot.slane %v239, %v258
    %v260 = vlaneseq
    %v261 = vshrl.u32 %v260, 7
    %v262 = vsub.s32 2, %v261
    %v263 = vrot.slane %v243, %v262
    %v264 = vlaneseq
    %v265 = vshrl.u32 %v264, 7
    %v266 = vsub.s32 2, %v265
    %v267 = vrot.slane %v247, %v266
    %v268 = vlaneseq
    %v269 = vshrl.u32 %v268, 7
    %v270 = vsub.s32 2, %v269
    %v271 = vrot.slane %v251, %v270
    %v272 = vmul.f32 %v234, %v259
    %v273 = vmul.f32 %v234, %v263
    %v274 = vmul.f32 %v234, %v267
    %v275 = vmul.f32 %v234, %v271
    %v276 = vadd.f32 %v228, %v272
    %v277 = vadd.f32 %v229, %v273
    %v278 = vadd.f32 %v230, %v274
    %v279 = vadd.f32 %v231, %v275
    %v282 = vunpack.c.l.b16 %v36
    %v283 = vunpack.c.h.b16 %v36
    %v284 = vunpack.c.l.b16 %v37
    %v285 = vpack.c.b16 %v282, %v282
    %v286 = vpack.c.b16 %v283, %v283
    %v287 = vpack.c.b16 %v284, %v284
    %v387 = vunpack.c.l.b16 %v38
    %v388 = vunpack.c.h.b16 %v38
    %v389 = vunpack.c.l.b16 %v39
    %v390 = vunpack.c.h.b16 %v39
    %v391 = vunpack.c.l.b16 %v40
    %v392 = vunpack.c.h.b16 %v40
    %v393 = vunpack.c.l.b16 %v41
    %v394 = vunpack.c.h.b16 %v41
    %v395 = vunpack.c.l.b16 %v42
    %v396 = vunpack.c.h.b16 %v42
    %v397 = vunpack.c.l.b16 %v43
    %v398 = vunpack.c.h.b16 %v43
    %v399 = vunpack.c.l.b16 %v44
    %v400 = vunpack.c.h.b16 %v44
    %v401 = vunpack.c.l.b16 %v45
    %v402 = vunpack.c.h.b16 %v45
    %v403 = vunpack.c.l.b16 %v46
    %v404 = vunpack.c.h.b16 %v46
    %v405 = vunpack.c.l.b16 %v47
    %v406 = vunpack.c.h.b16 %v47
    %v407 = vunpack.c.l.b16 %v48
    %v408 = vunpack.c.h.b16 %v48
    %v409 = vunpack.c.l.b16 %v49
    %v410 = vunpack.c.h.b16 %v49
    %v411 = vunpack.c.l.b16 %v50
    %v412 = vunpack.c.h.b16 %v50
    %v413 = vunpack.c.l.b16 %v51
    %v414 = vunpack.c.h.b16 %v51
    %v415 = vunpack.c.l.b16 %v52
    %v416 = vunpack.c.h.b16 %v52
    %v417 = vunpack.c.l.b16 %v53
    %v418 = vunpack.c.h.b16 %v53
    %v419 = vunpack.c.l.b16 %v54
    %v420 = vunpack.c.h.b16 %v54
    %v421 = vunpack.c.l.b16 %v55
    %v422 = vunpack.c.h.b16 %v55
    %v423 = vunpack.c.l.b16 %v56
    %v424 = vunpack.c.h.b16 %v56
    %v425 = vunpack.c.l.b16 %v57
    %v426 = vunpack.c.h.b16 %v57
    %v427 = vunpack.c.l.b16 %v58
    %v428 = vunpack.c.h.b16 %v58
    %v429 = vunpack.c.l.b16 %v59
    %v430 = vunpack.c.h.b16 %v59
    %v431 = vunpack.c.l.b16 %v60
    %v432 = vunpack.c.h.b16 %v60
    %v433 = vunpack.c.l.b16 %v61
    %v434 = vunpack.c.h.b16 %v61
    %v435 = vunpack.c.l.b16 %v62
    %v436 = vunpack.c.h.b16 %v62
    %v437 = vunpack.c.l.b16 %v63
    %v438 = vunpack.c.h.b16 %v63
    %v439 = vunpack.c.l.b16 %v64
    %v440 = vunpack.c.h.b16 %v64
    %v441 = vunpack.c.l.b16 %v65
    %v442 = vunpack.c.h.b16 %v65
    %v443 = vunpack.c.l.b16 %v66
    %v444 = vunpack.c.h.b16 %v66
    %v445 = vunpack.c.l.b16 %v67
    %v446 = vunpack.c.h.b16 %v67
    %v447 = vunpack.c.l.b16 %v68
    %v448 = vunpack.c.h.b16 %v68
    %v449 = vunpack.c.l.b16 %v69
    %v450 = vunpack.c.h.b16 %v69
    %v451 = vunpack.c.l.b16 %v70
    %v452 = vunpack.c.h.b16 %v70
    %v453 = vunpack.c.l.b16 %v71
    %v454 = vunpack.c.h.b16 %v71
    %v455 = vunpack.c.l.b16 %v72
    %v456 = vunpack.c.h.b16 %v72
    %v457 = vunpack.c.l.b16 %v73
    %v458 = vunpack.c.h.b16 %v73
    %v459 = vunpack.c.l.b16 %v74
    %v460 = vunpack.c.h.b16 %v74
    %v461 = vunpack.c.l.b16 %v75
    %v462 = vunpack.c.h.b16 %v75
    %v463 = vunpack.c.l.b16 %v76
    %v464 = vunpack.c.h.b16 %v76
    %v465 = vunpack.c.l.b16 %v77
    %v466 = vunpack.c.h.b16 %v77
    %v467 = vunpack.c.l.b16 %v78
    %v468 = vunpack.c.h.b16 %v78
    %v469 = vunpack.c.l.b16 %v79
    %v470 = vunpack.c.h.b16 %v79
    %v471 = vunpack.c.l.b16 %v80
    %v472 = vunpack.c.h.b16 %v80
    %v473 = vunpack.c.l.b16 %v81
    %v474 = vunpack.c.h.b16 %v81
    %v475 = vunpack.c.l.b16 %v82
    %v476 = vunpack.c.h.b16 %v82
    %v477 = vunpack.c.l.b16 %v83
    %v478 = vunpack.c.h.b16 %v83
    %v479 = vunpack.c.l.b16 %v84
    %v480 = vunpack.c.h.b16 %v84
    %v481 = vunpack.c.l.b16 %v85
    %v482 = vunpack.c.h.b16 %v85
    %v483 = vunpack.c.l.b16 %v86
    %v484 = vunpack.c.h.b16 %v86
    %v485 = vunpack.c.l.b16 %v87
    %v486 = vunpack.c.h.b16 %v87
    %v487 = vunpack.c.l.b16 %v88
    %v488 = vunpack.c.h.b16 %v88
    %v489 = vunpack.c.l.b16 %v89
    %v490 = vunpack.c.h.b16 %v89
    %v491 = vunpack.c.l.b16 %v90
    %v492 = vunpack.c.h.b16 %v90
    %v493 = vunpack.c.l.b16 %v91
    %v494 = vunpack.c.h.b16 %v91
    %v495 = vunpack.c.l.b16 %v92
    %v496 = vunpack.c.h.b16 %v92
    %v497 = vunpack.c.l.b16 %v93
    %v498 = vunpack.c.h.b16 %v93
    %v499 = vunpack.c.l.b16 %v94
    %v500 = vunpack.c.h.b16 %v94
    %v501 = vunpack.c.l.b16 %v95
    %v502 = vunpack.c.h.b16 %v95
    %v503 = vunpack.c.l.b16 %v96
    %v504 = vunpack.c.h.b16 %v96
    %v505 = vunpack.c.l.b16 %v97
    %v506 = vunpack.c.h.b16 %v97
    %v507 = vunpack.c.l.b16 %v98
    %v508 = vunpack.c.h.b16 %v98
    %v509 = vunpack.c.l.b16 %v99
    %v510 = vunpack.c.h.b16 %v99
    %v511 = vunpack.c.l.b16 %v100
    %v512 = vunpack.c.h.b16 %v100
    %v513 = vunpack.c.l.b16 %v101
    %v514 = vunpack.c.h.b16 %v101
    %v515 = vunpack.c.l.b16 %v102
    %v516 = vunpack.c.h.b16 %v102
    %v517 = vunpack.c.l.b16 %v103
    %v518 = vunpack.c.h.b16 %v103
    %v519 = vunpack.c.l.b16 %v104
    %v520 = vunpack.c.h.b16 %v104
    %v521 = vunpack.c.l.b16 %v105
    %v522 = vunpack.c.h.b16 %v105
    %v523 = vunpack.c.l.b16 %v106
    %v524 = vunpack.c.h.b16 %v106
    %v525 = vunpack.c.l.b16 %v107
    %v526 = vunpack.c.h.b16 %v107
    %v527 = vunpack.c.l.b16 %v108
    %v528 = vunpack.c.h.b16 %v108
    %v529 = vunpack.c.l.b16 %v109
    %v530 = vunpack.c.h.b16 %v109
    %v531 = vunpack.c.l.b16 %v110
    %v532 = vunpack.c.h.b16 %v110
    %v533 = vunpack.c.l.b16 %v111
    %v534 = vunpack.c.h.b16 %v111
    %v535 = vunpack.c.l.b16 %v112
    %v536 = vunpack.c.h.b16 %v112
    %v537 = vunpack.c.l.b16 %v113
    %v538 = vunpack.c.h.b16 %v113
    %v539 = vunpack.c.l.b16 %v114
    %v540 = vunpack.c.h.b16 %v114
    %v541 = vunpack.c.l.b16 %v115
    %v542 = vunpack.c.h.b16 %v115
    %v543 = vunpack.c.l.b16 %v116
    %v544 = vunpack.c.h.b16 %v116
    %v545 = vunpack.c.l.b16 %v117
    %v546 = vunpack.c.h.b16 %v117
    %v547 = vunpack.c.l.b16 %v118
    %v548 = vunpack.c.h.b16 %v118
    %v549 = vunpack.c.l.b16 %v119
    %v550 = vunpack.c.h.b16 %v119
    %v551 = vunpack.c.l.b16 %v120
    %v552 = vunpack.c.h.b16 %v120
    %v553 = vunpack.c.l.b16 %v121
    %v554 = vunpack.c.h.b16 %v121
    %v555 = vunpack.c.l.b16 %v122
    %v556 = vunpack.c.h.b16 %v122
    %v557 = vunpack.c.l.b16 %v123
    %v558 = vunpack.c.h.b16 %v123
    %v559 = vunpack.c.l.b16 %v124
    %v560 = vunpack.c.h.b16 %v124
    %v561 = vunpack.c.l.b16 %v125
    %v562 = vunpack.c.h.b16 %v125
    %v563 = vunpack.c.l.b16 %v126
    %v564 = vunpack.c.h.b16 %v126
    %v565 = vunpack.c.l.b16 %v127
    %v566 = vunpack.c.h.b16 %v127
    %v567 = vunpack.c.l.b16 %v128
    %v568 = vunpack.c.h.b16 %v128
    %v569 = vunpack.c.l.b16 %v129
    %v570 = vunpack.c.h.b16 %v129
    %v571 = vunpack.c.l.b16 %v130
    %v572 = vunpack.c.h.b16 %v130
    %v573 = vunpack.c.l.b16 %v131
    %v574 = vunpack.c.h.b16 %v131
    %v575 = vunpack.c.l.b16 %v132
    %v576 = vunpack.c.h.b16 %v132
    %v577 = vunpack.c.l.b16 %v133
    %v578 = vunpack.c.h.b16 %v133
    %v579 = vpack.c.b16 %v391, %v387
    %v580 = vpack.c.b16 %v392, %v388
    %v581 = vpack.c.b16 %v393, %v389
    %v582 = vpack.c.b16 %v394, %v390
    %v583 = vpack.c.b16 %v399, %v395
    %v584 = vpack.c.b16 %v400, %v396
    %v585 = vpack.c.b16 %v401, %v397
    %v586 = vpack.c.b16 %v402, %v398
    %v587 = vpack.c.b16 %v407, %v403
    %v588 = vpack.c.b16 %v408, %v404
    %v589 = vpack.c.b16 %v409, %v405
    %v590 = vpack.c.b16 %v410, %v406
    %v591 = vpack.c.b16 %v415, %v411
    %v592 = vpack.c.b16 %v416, %v412
    %v593 = vpack.c.b16 %v417, %v413
    %v594 = vpack.c.b16 %v418, %v414
    %v595 = vpack.c.b16 %v423, %v419
    %v596 = vpack.c.b16 %v424, %v420
    %v597 = vpack.c.b16 %v425, %v421
    %v598 = vpack.c.b16 %v426, %v422
    %v599 = vpack.c.b16 %v431, %v427
    %v600 = vpack.c.b16 %v432, %v428
    %v601 = vpack.c.b16 %v433, %v429
    %v602 = vpack.c.b16 %v434, %v430
    %v603 = vpack.c.b16 %v439, %v435
    %v604 = vpack.c.b16 %v440, %v436
    %v605 = vpack.c.b16 %v441, %v437
    %v606 = vpack.c.b16 %v442, %v438
    %v607 = vpack.c.b16 %v447, %v443
    %v608 = vpack.c.b16 %v448, %v444
    %v609 = vpack.c.b16 %v449, %v445
    %v610 = vpack.c.b16 %v450, %v446
    %v611 = vpack.c.b16 %v455, %v451
    %v612 = vpack.c.b16 %v456, %v452
    %v613 = vpack.c.b16 %v457, %v453
    %v614 = vpack.c.b16 %v458, %v454
    %v615 = vpack.c.b16 %v463, %v459
    %v616 = vpack.c.b16 %v464, %v460
    %v617 = vpack.c.b16 %v465, %v461
    %v618 = vpack.c.b16 %v466, %v462
    %v619 = vpack.c.b16 %v471, %v467
    %v620 = vpack.c.b16 %v472, %v468
    %v621 = vpack.c.b16 %v473, %v469
    %v622 = vpack.c.b16 %v474, %v470
    %v623 = vpack.c.b16 %v479, %v475
    %v624 = vpack.c.b16 %v480, %v476
    %v625 = vpack.c.b16 %v481, %v477
    %v626 = vpack.c.b16 %v482, %v478
    %v627 = vpack.c.b16 %v487, %v483
    %v628 = vpack.c.b16 %v488, %v484
    %v629 = vpack.c.b16 %v489, %v485
    %v630 = vpack.c.b16 %v490, %v486
    %v631 = vpack.c.b16 %v495, %v491
    %v632 = vpack.c.b16 %v496, %v492
    %v633 = vpack.c.b16 %v497, %v493
    %v634 = vpack.c.b16 %v498, %v494
    %v635 = vpack.c.b16 %v503, %v499
    %v636 = vpack.c.b16 %v504, %v500
    %v637 = vpack.c.b16 %v505, %v501
    %v638 = vpack.c.b16 %v506, %v502
    %v639 = vpack.c.b16 %v511, %v507
    %v640 = vpack.c.b16 %v512, %v508
    %v641 = vpack.c.b16 %v513, %v509
    %v642 = vpack.c.b16 %v514, %v510
    %v643 = vpack.c.b16 %v519, %v515
    %v644 = vpack.c.b16 %v520, %v516
    %v645 = vpack.c.b16 %v521, %v517
    %v646 = vpack.c.b16 %v522, %v518
    %v647 = vpack.c.b16 %v527, %v523
    %v648 = vpack.c.b16 %v528, %v524
    %v649 = vpack.c.b16 %v529, %v525
    %v650 = vpack.c.b16 %v530, %v526
    %v651 = vpack.c.b16 %v535, %v531
    %v652 = vpack.c.b16 %v536, %v532
    %v653 = vpack.c.b16 %v537, %v533
    %v654 = vpack.c.b16 %v538, %v534
    %v655 = vpack.c.b16 %v543, %v539
    %v656 = vpack.c.b16 %v544, %v540
    %v657 = vpack.c.b16 %v545, %v541
    %v658 = vpack.c.b16 %v546, %v542
    %v659 = vpack.c.b16 %v551, %v547
    %v660 = vpack.c.b16 %v552, %v548
    %v661 = vpack.c.b16 %v553, %v549
    %v662 = vpack.c.b16 %v554, %v550
    %v663 = vpack.c.b16 %v559, %v555
    %v664 = vpack.c.b16 %v560, %v556
    %v665 = vpack.c.b16 %v561, %v557
    %v666 = vpack.c.b16 %v562, %v558
    %v667 = vpack.c.b16 %v567, %v563
    %v668 = vpack.c.b16 %v568, %v564
    %v669 = vpack.c.b16 %v569, %v565
    %v670 = vpack.c.b16 %v570, %v566
    %v671 = vpack.c.b16 %v575, %v571
    %v672 = vpack.c.b16 %v576, %v572
    %v673 = vpack.c.b16 %v577, %v573
    %v674 = vpack.c.b16 %v578, %v574
    %771 = vmatprep.subr.bf16.mxu0 %v580
    %772 = vmatpush1.bf16.msra.mxu0 %v579
    %773 = vmatprep.subr.bf16.mxu0 %v584
    %774 = vmatpush1.bf16.msra.mxu0 %v583
    %775 = vmatprep.subr.bf16.mxu0 %v588
    %776 = vmatpush1.bf16.msra.mxu0 %v587
    %777 = vmatprep.subr.bf16.mxu0 %v592
    %778 = vmatpush1.bf16.msra.mxu0 %v591
    %779 = vmatprep.subr.bf16.mxu0 %v596
    %780 = vmatpush1.bf16.msra.mxu0 %v595
    %781 = vmatprep.subr.bf16.mxu0 %v600
    %782 = vmatpush1.bf16.msra.mxu0 %v599
    %783 = vmatprep.subr.bf16.mxu0 %v604
    %784 = vmatpush1.bf16.msra.mxu0 %v603
    %785 = vmatprep.subr.bf16.mxu0 %v608
    %786 = vmatpush1.bf16.msra.mxu0 %v607
    %787 = vmatprep.subr.bf16.mxu0 %v612
    %788 = vmatpush1.bf16.msra.mxu0 %v611
    %789 = vmatprep.subr.bf16.mxu0 %v616
    %790 = vmatpush1.bf16.msra.mxu0 %v615
    %791 = vmatprep.subr.bf16.mxu0 %v620
    %792 = vmatpush1.bf16.msra.mxu0 %v619
    %793 = vmatprep.subr.bf16.mxu0 %v624
    %794 = vmatpush1.bf16.msra.mxu0 %v623
    %795 = vmatprep.subr.bf16.mxu0 %v628
    %796 = vmatpush1.bf16.msra.mxu0 %v627
    %797 = vmatprep.subr.bf16.mxu0 %v632
    %798 = vmatpush1.bf16.msra.mxu0 %v631
    %799 = vmatprep.subr.bf16.mxu0 %v636
    %800 = vmatpush1.bf16.msra.mxu0 %v635
    %801 = vmatprep.subr.bf16.mxu0 %v640
    %802 = vmatpush1.bf16.msra.mxu0 %v639
    %803 = vmatprep.mubr.bf16.mxu0 %v286
    %804 = vmatmul.mubr.bf16.gmra.mrb[0].mxu0 %v285
    %v805 = vpop.f32.mrb[0].mxu0
    %v806 = vadd.f32 %v276, %v805
    %v807 = vpop.f32.mrb[0].mxu0
    %v808 = vadd.f32 %v277, %v807
    %v809 = vpop.f32.mrb[0].mxu0
    %v810 = vpop.f32.mrb[0].mxu0
    %811 = vdwg.mxu0
    %812 = vmatprep.subr.bf16.mxu0 %v644
    %813 = vmatpush1.bf16.msra.mxu0 %v643
    %814 = vmatprep.subr.bf16.mxu0 %v648
    %815 = vmatpush1.bf16.msra.mxu0 %v647
    %816 = vmatprep.subr.bf16.mxu0 %v652
    %817 = vmatpush1.bf16.msra.mxu0 %v651
    %818 = vmatprep.subr.bf16.mxu0 %v656
    %819 = vmatpush1.bf16.msra.mxu0 %v655
    %820 = vmatprep.subr.bf16.mxu0 %v660
    %821 = vmatpush1.bf16.msra.mxu0 %v659
    %822 = vmatprep.subr.bf16.mxu0 %v664
    %823 = vmatpush1.bf16.msra.mxu0 %v663
    %824 = vmatprep.subr.bf16.mxu0 %v668
    %825 = vmatpush1.bf16.msra.mxu0 %v667
    %826 = vmatprep.subr.bf16.mxu0 %v672
    %827 = vmatpush1.bf16.msra.mxu0 %v671
    %828 = vmatprep.subr.bf16.mxu0 0
    %829 = vmatpush1.bf16.msra.mxu0 0
    %830 = vmatprep.subr.bf16.mxu0 0
    %831 = vmatpush1.bf16.msra.mxu0 0
    %832 = vmatprep.subr.bf16.mxu0 0
    %833 = vmatpush1.bf16.msra.mxu0 0
    %834 = vmatprep.subr.bf16.mxu0 0
    %835 = vmatpush1.bf16.msra.mxu0 0
    %836 = vmatprep.subr.bf16.mxu0 0
    %837 = vmatpush1.bf16.msra.mxu0 0
    %838 = vmatprep.subr.bf16.mxu0 0
    %839 = vmatpush1.bf16.msra.mxu0 0
    %840 = vmatprep.subr.bf16.mxu0 0
    %841 = vmatpush1.bf16.msra.mxu0 0
    %842 = vmatprep.subr.bf16.mxu0 0
    %843 = vmatpush1.bf16.msra.mxu0 0
    %844 = vmatprep.mubr.bf16.mxu0 0
    %845 = vmatmul.mubr.bf16.gmra.mrb[0].mxu0 %v287
    %v846 = vpop.f32.mrb[0].mxu0
    %v847 = vadd.f32 %v806, %v846
    %v848 = vpop.f32.mrb[0].mxu0
    %v849 = vadd.f32 %v808, %v848
    %v850 = vpop.f32.mrb[0].mxu0
    %v851 = vpop.f32.mrb[0].mxu0
    %852 = vdwg.mxu0
    %853 = vmatprep.subr.bf16.mxu0 %v582
    %854 = vmatpush1.bf16.msra.mxu0 %v581
    %855 = vmatprep.subr.bf16.mxu0 %v586
    %856 = vmatpush1.bf16.msra.mxu0 %v585
    %857 = vmatprep.subr.bf16.mxu0 %v590
    %858 = vmatpush1.bf16.msra.mxu0 %v589
    %859 = vmatprep.subr.bf16.mxu0 %v594
    %860 = vmatpush1.bf16.msra.mxu0 %v593
    %861 = vmatprep.subr.bf16.mxu0 %v598
    %862 = vmatpush1.bf16.msra.mxu0 %v597
    %863 = vmatprep.subr.bf16.mxu0 %v602
    %864 = vmatpush1.bf16.msra.mxu0 %v601
    %865 = vmatprep.subr.bf16.mxu0 %v606
    %866 = vmatpush1.bf16.msra.mxu0 %v605
    %867 = vmatprep.subr.bf16.mxu0 %v610
    %868 = vmatpush1.bf16.msra.mxu0 %v609
    %869 = vmatprep.subr.bf16.mxu0 %v614
    %870 = vmatpush1.bf16.msra.mxu0 %v613
    %871 = vmatprep.subr.bf16.mxu0 %v618
    %872 = vmatpush1.bf16.msra.mxu0 %v617
    %873 = vmatprep.subr.bf16.mxu0 %v622
    %874 = vmatpush1.bf16.msra.mxu0 %v621
    %875 = vmatprep.subr.bf16.mxu0 %v626
    %876 = vmatpush1.bf16.msra.mxu0 %v625
    %877 = vmatprep.subr.bf16.mxu0 %v630
    %878 = vmatpush1.bf16.msra.mxu0 %v629
    %879 = vmatprep.subr.bf16.mxu0 %v634
    %880 = vmatpush1.bf16.msra.mxu0 %v633
    %881 = vmatprep.subr.bf16.mxu0 %v638
    %882 = vmatpush1.bf16.msra.mxu0 %v637
    %883 = vmatprep.subr.bf16.mxu0 %v642
    %884 = vmatpush1.bf16.msra.mxu0 %v641
    %885 = vmatprep.mubr.bf16.mxu0 %v286
    %886 = vmatmul.mubr.bf16.gmra.mrb[0].mxu0 %v285
    %v887 = vpop.f32.mrb[0].mxu0
    %v888 = vadd.f32 %v278, %v887
    %v889 = vpop.f32.mrb[0].mxu0
    %v890 = vadd.f32 %v279, %v889
    %v891 = vpop.f32.mrb[0].mxu0
    %v892 = vpop.f32.mrb[0].mxu0
    %893 = vdwg.mxu0
    %894 = vmatprep.subr.bf16.mxu0 %v646
    %895 = vmatpush1.bf16.msra.mxu0 %v645
    %896 = vmatprep.subr.bf16.mxu0 %v650
    %897 = vmatpush1.bf16.msra.mxu0 %v649
    %898 = vmatprep.subr.bf16.mxu0 %v654
    %899 = vmatpush1.bf16.msra.mxu0 %v653
    %900 = vmatprep.subr.bf16.mxu0 %v658
    %901 = vmatpush1.bf16.msra.mxu0 %v657
    %902 = vmatprep.subr.bf16.mxu0 %v662
    %903 = vmatpush1.bf16.msra.mxu0 %v661
    %904 = vmatprep.subr.bf16.mxu0 %v666
    %905 = vmatpush1.bf16.msra.mxu0 %v665
    %906 = vmatprep.subr.bf16.mxu0 %v670
    %907 = vmatpush1.bf16.msra.mxu0 %v669
    %908 = vmatprep.subr.bf16.mxu0 %v674
    %909 = vmatpush1.bf16.msra.mxu0 %v673
    %910 = vmatprep.subr.bf16.mxu0 0
    %911 = vmatpush1.bf16.msra.mxu0 0
    %912 = vmatprep.subr.bf16.mxu0 0
    %913 = vmatpush1.bf16.msra.mxu0 0
    %914 = vmatprep.subr.bf16.mxu0 0
    %915 = vmatpush1.bf16.msra.mxu0 0
    %916 = vmatprep.subr.bf16.mxu0 0
    %917 = vmatpush1.bf16.msra.mxu0 0
    %918 = vmatprep.subr.bf16.mxu0 0
    %919 = vmatpush1.bf16.msra.mxu0 0
    %920 = vmatprep.subr.bf16.mxu0 0
    %921 = vmatpush1.bf16.msra.mxu0 0
    %922 = vmatprep.subr.bf16.mxu0 0
    %923 = vmatpush1.bf16.msra.mxu0 0
    %924 = vmatprep.subr.bf16.mxu0 0
    %925 = vmatpush1.bf16.msra.mxu0 0
    %926 = vmatprep.mubr.bf16.mxu0 0
    %927 = vmatmul.mubr.bf16.gmra.mrb[0].mxu0 %v287
    %v928 = vpop.f32.mrb[0].mxu0
    %v929 = vadd.f32 %v888, %v928
    %v930 = vpop.f32.mrb[0].mxu0
    %v931 = vadd.f32 %v890, %v930
    %v932 = vpop.f32.mrb[0].mxu0
    %v933 = vpop.f32.mrb[0].mxu0
    %934 = vdwg.mxu0
    %v935 = vld [vmem:[%s2] sm:$0x3f]
    %937 = vset.pattern.permute.xlu0 0
    %938 = vperm.xlu0 %937, %v935
    %v939 = vpop.permute.xlu0 %938
    %v941 = vadd.f32 %v847, %v939
    %v942 = vadd.f32 %v849, %v939
    %v943 = vadd.f32 %v929, %v939
    %v944 = vadd.f32 %v931, %v939
    %945 = vst [vmem:[#allocation5] sm:$0x3f] %v941
    %946 = vst [vmem:[#allocation5 + $0x8] sm:$0x3f] %v942
    %947 = vst [vmem:[#allocation5 + $0x10] sm:$0x3f] %v943
    %948 = vst [vmem:[#allocation5 + $0x18] sm:$0x3f] %v944
    // Predicated region
    $region26: #{tpu_custom_call.1} parent=1 // pred_check
      _
    $region27: #{tpu_custom_call.1} parent=1 // pred_check_branch
      %950 = sbr.rel (0) target = $region29
    $region28: #{tpu_custom_call.1} parent=1 // pred_region
      %s952 = ssub.s32 512, 512
      %953 = vsyncadd [#allocation4], %s952
      %s955 = sshll.u32 [#allocation5], 4
      %s956 = int_to_ptr.vmem [resolvable:$true] %s955
      %958 = dma.vmem_to_hbm [thread:$0]  %s956, 512, %s5, [#allocation4]
    $region29: #{tpu_custom_call.1} parent=1 // pred_fallthru
      _
    // Predicated region
    $region30: #{tpu_custom_call.1} parent=1 // pred_check
      _
    $region31: #{tpu_custom_call.1} parent=1 // pred_check_branch
      %960 = sbr.rel (0) target = $region33
    $region32: #{tpu_custom_call.1} parent=1 // pred_region
      %961 = dma.done [#allocation4], 512
    $region33: #{tpu_custom_call.1} parent=1 // pred_fallthru
      _
    %962 = vsyncpa [#allocation3], 1
    %963 = vsyncpa [#allocation4], 1

</llo_original>
